<compile_context>
chip_gen: v7x
topology: tpu7x:2x2x1
jax: 0.10.0
libtpu: 0.0.40
codegen_flags: <defaults>
</compile_context>

<pallas_src>
import jax
import jax.numpy as jnp
from jax.experimental import pallas as pl
from jax.experimental.pallas import tpu as pltpu


def _largest_divisor_tile(dim, align, max_tile):
    """Largest multiple of `align` that divides `dim` and is <= max(max_tile, align).

    Assumes dim % align == 0.
    """
    t = min(dim, max(align, (max_tile // align) * align))
    while dim % t != 0:
        t -= align
    return t


def _vmem_config():
    """(vmem_limit_bytes, double-buffered input-footprint budget) per generation."""
    try:
        phys = int(pltpu.get_tpu_info().vmem_capacity_bytes)
    except Exception:
        phys = 64 * 1024 * 1024  # conservative: v7x per-TC physical VMEM
    limit = min(64 * 1024 * 1024, phys - 16 * 1024 * 1024)  # leave headroom
    limit = max(limit, 32 * 1024 * 1024)
    budget = limit // 2  # 2x double-buffered input tiles must fit the limit
    return limit, budget


def _make_kernel(margin):
    margin = float(margin)

    def kernel(a_ref, p_ref, n_ref, al_ref, plab_ref, nlab_ref, o_ref):
        kb = pl.program_id(1)  # B (reduction) axis, innermost

        @pl.when(kb == 0)
        def _():
            o_ref[...] = jnp.zeros_like(o_ref)

        # Upcast once in-kernel (no-op for f32; keeps bf16 streaming cheap on HBM).
        a = a_ref[...].astype(jnp.float32)
        p = p_ref[...].astype(jnp.float32)
        n = n_ref[...].astype(jnp.float32)
        al = al_ref[...].astype(jnp.float32)
        plab = plab_ref[...].astype(jnp.float32)
        nlab = nlab_ref[...].astype(jnp.float32)

        # dist_pos - dist_neg_a = sum((a-p)^2 - (a-n)^2) = sum((p-n)(p+n-2a))
        feat = (p - n) * (p + n - 2.0 * a)
        # lbl_an - lbl_ap = sum((al-nlab)^2 - (al-plab)^2)
        #                 = sum((plab-nlab)(2*al - plab - nlab))
        lab = (plab - nlab) * (2.0 * al - plab - nlab)
        contrib = feat + margin * lab

        # Output block is resident across the B axis -> accumulate in place.
        o_ref[...] += jnp.sum(contrib, axis=0, keepdims=True)

        # relu only once the full B reduction is done.
        @pl.when(kb == pl.num_programs(1) - 1)
        def _():
            o_ref[...] = jnp.maximum(o_ref[...], 0.0)

    return kernel


def triplet_loss_self(anchor, positive, negative,
                      anchor_label, positive_label, negative_label,
                      margin=0.5, max_tile_b=None):
    """Pallas implementation of TripletLoss_self.forward. Returns a scalar."""
    assert anchor.shape == positive.shape == negative.shape
    assert anchor_label.shape == positive_label.shape == negative_label.shape
    assert anchor.shape == anchor_label.shape

    B = anchor.shape[0]
    flat = lambda x: jnp.asarray(x).reshape(B, -1)
    ins = [flat(x) for x in (anchor, positive, negative,
                             anchor_label, positive_label, negative_label)]
    D_orig = ins[0].shape[1]
    D = D_orig

    vmem_limit, budget = _vmem_config()
    # Bytes per element summed across the 6 input streams (native dtypes).
    bytes_per_elem = sum(jnp.dtype(x.dtype).itemsize for x in ins)

    # ---- D (lane / parallel) axis ------------------------------------------
    if D % 128 != 0:
        # Full-extent D tile is always legal; only pad D (with zero columns,
        # which contribute exactly 0 to every per-column sum and to the final
        # mean since we divide by D_orig) if the full-extent tile cannot fit
        # the VMEM budget even at the minimum tile_b.
        min_b = min(B, 8)
        if 2 * bytes_per_elem * min_b * D > budget:
            pad_d = (-D) % 128
            ins = [jnp.pad(x, ((0, 0), (0, pad_d))) for x in ins]
            D = D + pad_d

    if D % 128 == 0:
        # Prefer big contiguous row tiles, but when D >= 256 cap at D/2 so the
        # "parallel" axis has >= 2 blocks and both v7x TensorCores get work
        # (no-op cost on single-TC v5e/v6e).
        cap_d = D // 2 if D >= 256 else D
        max_d_budget = budget // (2 * bytes_per_elem * 8)
        max_d_budget = max(128, (max_d_budget // 128) * 128)
        tile_d = _largest_divisor_tile(D, 128, min(cap_d, max_d_budget))
    else:
        tile_d = D  # small / unaligned: full extent (fits the budget by check above)
        # TODO(synk): for tiny unaligned D on v7x a split-B (2, D) scheme would
        # keep both TensorCores busy; not worth it at these sizes.

    # ---- B (sublane / reduction) axis --------------------------------------
    max_b = budget // (2 * bytes_per_elem * tile_d)
    max_b = max(8, (max_b // 8) * 8)
    if max_tile_b is not None:
        max_b = max(8, min(max_b, int(max_tile_b)))

    if B % 8 == 0:
        tile_b = _largest_divisor_tile(B, 8, max_b)
    elif B <= max_b or B <= 8:
        tile_b = B  # full extent is legal and fits
    else:
        # Pad with zero rows (contribute 0 to the column sums) so B tiles.
        pad_b = (-B) % 8
        ins = [jnp.pad(x, ((0, pad_b), (0, 0))) for x in ins]
        B_p = B + pad_b
        tile_b = _largest_divisor_tile(B_p, 8, max_b)
        B = B_p

    nd = D // tile_d
    nb = B // tile_b

    in_spec = pl.BlockSpec((tile_b, tile_d), lambda i, k: (k, i))
    out_spec = pl.BlockSpec((1, tile_d), lambda i, k: (0, i))

    cost = pl.CostEstimate(
        flops=13 * B * D,
        transcendentals=0,
        bytes_accessed=bytes_per_elem * B * D + 4 * D,
    )

    per_col = pl.pallas_call(
        _make_kernel(margin),
        out_shape=jax.ShapeDtypeStruct((1, D), jnp.float32),
        grid_spec=pltpu.PrefetchScalarGridSpec(
            num_scalar_prefetch=0,
            grid=(nd, nb),
            in_specs=[in_spec] * 6,
            out_specs=out_spec,
        ),
        compiler_params=pltpu.CompilerParams(
            # D tiles are independent (each owns its output block) -> parallel
            # (megacore sharding on v7x). B is the reduction -> last, arbitrary.
            dimension_semantics=("parallel", "arbitrary"),
            vmem_limit_bytes=vmem_limit,
        ),
        cost_estimate=cost,
    )(*ins)

    # losses.mean(): mean over the real (unpadded) surviving columns; padded
    # columns are exactly 0 so they do not perturb the sum.
    return jnp.sum(per_col) / D_orig


def _reference(anchor, positive, negative, al, plab, nlab, margin=0.5):
    f32 = lambda x: x.astype(jnp.float32)
    calc = lambda x1, x2: jnp.sum((f32(x1) - f32(x2)) ** 2, axis=0)
    dp = calc(anchor, positive)
    dna = calc(anchor, negative)
    alpha = calc(al, nlab) - calc(al, plab)
    return jnp.mean(jnp.maximum(dp - dna + margin * alpha, 0.0))


def _run_case(key, B, D, dtype=jnp.float32, rtol=1e-5, atol=1e-5, **kw):
    ks = jax.random.split(key, 6)
    args = [jax.random.normal(k, (B, D), dtype=jnp.float32).astype(dtype) for k in ks]
    out = jax.block_until_ready(triplet_loss_self(*args, **kw))
    ref = _reference(*args)
    assert jnp.allclose(out, ref, rtol=rtol, atol=atol), (B, D, dtype, out, ref)
    return out


if __name__ == "__main__":
    key = jax.random.PRNGKey(0)
    k1, k2, k3, k4, k5 = jax.random.split(key, 5)

    # Toy shape implied by the module usage: (seq=8, hidden=32), single tile.
    _run_case(k1, 8, 32)
    # Multi-D-tile path (nd >= 2, parallel axis exercised).
    _run_case(k2, 16, 1024)
    # Multi-B-tile path (nb > 1: accumulator zero / accumulate / relu path).
    _run_case(k3, 32, 256, max_tile_b=16)
    # Unaligned B and D: full-extent fallback path.
    _run_case(k4, 13, 96)
    # Native bf16 streaming with f32 in-kernel accumulation.
    _run_case(k5, 16, 256, dtype=jnp.bfloat16, rtol=2e-2, atol=2e-2)

    print("KERNEL_OK")
</pallas_src>

<mosaic_0001>
module attributes {stable_mosaic.version = 11 : i64} {
  func.func @kernel(%arg0: i32, %arg1: i32, %arg2: memref<8x32xf32, #tpu.memory_space<vmem>>, %arg3: memref<8x32xf32, #tpu.memory_space<vmem>>, %arg4: memref<8x32xf32, #tpu.memory_space<vmem>>, %arg5: memref<8x32xf32, #tpu.memory_space<vmem>>, %arg6: memref<8x32xf32, #tpu.memory_space<vmem>>, %arg7: memref<8x32xf32, #tpu.memory_space<vmem>>, %arg8: memref<1x32xf32, #tpu.memory_space<vmem>>) attributes {dimension_semantics = [#tpu.dimension_semantics<parallel>, #tpu.dimension_semantics<arbitrary>], iteration_bounds = array<i64: 1, 1>, scalar_prefetch = 0 : i64, scratch_operands = 0 : i64, tpu.core_type = #tpu.core_type<tc>, window_params = [{transform_indices = @transform_0, window_bounds = array<i64: 8, 32>}, {transform_indices = @transform_1, window_bounds = array<i64: 8, 32>}, {transform_indices = @transform_2, window_bounds = array<i64: 8, 32>}, {transform_indices = @transform_3, window_bounds = array<i64: 8, 32>}, {transform_indices = @transform_4, window_bounds = array<i64: 8, 32>}, {transform_indices = @transform_5, window_bounds = array<i64: 8, 32>}, {transform_indices = @transform_6, window_bounds = array<i64: 1, 32>}]} {
    %c0_i32 = arith.constant 0 : i32
    %0 = arith.cmpi eq, %arg1, %c0_i32 : i32
    %1 = arith.extui %0 : i1 to i32
    %c0_i32_0 = arith.constant 0 : i32
    %2 = arith.cmpi ne, %1, %c0_i32_0 : i32
    scf.if %2 {
      %cst_21 = arith.constant 0.000000e+00 : f32
      %32 = vector.broadcast %cst_21 : f32 to vector<1x32xf32>
      %c0_22 = arith.constant 0 : index
      %c0_23 = arith.constant 0 : index
      %33 = vector.load %arg8[%c0_22, %c0_23] : memref<1x32xf32, #tpu.memory_space<vmem>>, vector<1x32xf32>
      tpu.vector_store %arg8[%c0_22, %c0_23], %32 {strides = array<i32>} : memref<1x32xf32, #tpu.memory_space<vmem>>, vector<1x32xf32>,
    } else {
    }
    %c0 = arith.constant 0 : index
    %c0_1 = arith.constant 0 : index
    %3 = vector.load %arg2[%c0, %c0_1] : memref<8x32xf32, #tpu.memory_space<vmem>>, vector<8x32xf32>
    %c0_2 = arith.constant 0 : index
    %c0_3 = arith.constant 0 : index
    %4 = vector.load %arg3[%c0_2, %c0_3] : memref<8x32xf32, #tpu.memory_space<vmem>>, vector<8x32xf32>
    %c0_4 = arith.constant 0 : index
    %c0_5 = arith.constant 0 : index
    %5 = vector.load %arg4[%c0_4, %c0_5] : memref<8x32xf32, #tpu.memory_space<vmem>>, vector<8x32xf32>
    %c0_6 = arith.constant 0 : index
    %c0_7 = arith.constant 0 : index
    %6 = vector.load %arg5[%c0_6, %c0_7] : memref<8x32xf32, #tpu.memory_space<vmem>>, vector<8x32xf32>
    %c0_8 = arith.constant 0 : index
    %c0_9 = arith.constant 0 : index
    %7 = vector.load %arg6[%c0_8, %c0_9] : memref<8x32xf32, #tpu.memory_space<vmem>>, vector<8x32xf32>
    %c0_10 = arith.constant 0 : index
    %c0_11 = arith.constant 0 : index
    %8 = vector.load %arg7[%c0_10, %c0_11] : memref<8x32xf32, #tpu.memory_space<vmem>>, vector<8x32xf32>
    %9 = arith.subf %4, %5 : vector<8x32xf32>
    %10 = arith.addf %4, %5 : vector<8x32xf32>
    %cst = arith.constant 2.000000e+00 : f32
    %11 = vector.broadcast %cst : f32 to vector<8x32xf32>
    %12 = arith.mulf %11, %3 : vector<8x32xf32>
    %13 = arith.subf %10, %12 : vector<8x32xf32>
    %14 = arith.mulf %9, %13 : vector<8x32xf32>
    %15 = arith.subf %7, %8 : vector<8x32xf32>
    %cst_12 = arith.constant 2.000000e+00 : f32
    %16 = vector.broadcast %cst_12 : f32 to vector<8x32xf32>
    %17 = arith.mulf %16, %6 : vector<8x32xf32>
    %18 = arith.subf %17, %7 : vector<8x32xf32>
    %19 = arith.subf %18, %8 : vector<8x32xf32>
    %20 = arith.mulf %15, %19 : vector<8x32xf32>
    %cst_13 = arith.constant 5.000000e-01 : f32
    %21 = vector.broadcast %cst_13 : f32 to vector<8x32xf32>
    %22 = arith.mulf %21, %20 : vector<8x32xf32>
    %23 = arith.addf %14, %22 : vector<8x32xf32>
    %c0_14 = arith.constant 0 : index
    %c0_15 = arith.constant 0 : index
    %24 = vector.load %arg8[%c0_14, %c0_15] : memref<1x32xf32, #tpu.memory_space<vmem>>, vector<1x32xf32>
    %cst_16 = arith.constant dense<0.000000e+00> : vector<32xf32>
    %25 = vector.multi_reduction <add>, %23, %cst_16 [0] : vector<8x32xf32> to vector<32xf32>
    %26 = vector.shape_cast %25 : vector<32xf32> to vector<1x32xf32>
    %27 = arith.addf %24, %26 : vector<1x32xf32>
    %c0_17 = arith.constant 0 : index
    %c0_18 = arith.constant 0 : index
    %28 = vector.load %arg8[%c0_17, %c0_18] : memref<1x32xf32, #tpu.memory_space<vmem>>, vector<1x32xf32>
    tpu.vector_store %arg8[%c0_17, %c0_18], %27 {strides = array<i32>} : memref<1x32xf32, #tpu.memory_space<vmem>>, vector<1x32xf32>,
    %c0_i32_19 = arith.constant 0 : i32
    %29 = arith.cmpi eq, %arg1, %c0_i32_19 : i32
    %30 = arith.extui %29 : i1 to i32
    %c0_i32_20 = arith.constant 0 : i32
    %31 = arith.cmpi ne, %30, %c0_i32_20 : i32
    scf.if %31 {
      %c0_21 = arith.constant 0 : index
      %c0_22 = arith.constant 0 : index
      %32 = vector.load %arg8[%c0_21, %c0_22] : memref<1x32xf32, #tpu.memory_space<vmem>>, vector<1x32xf32>
      %cst_23 = arith.constant 0.000000e+00 : f32
      %33 = vector.broadcast %cst_23 : f32 to vector<1x32xf32>
      %34 = arith.maximumf %32, %33 : vector<1x32xf32>
      %c0_24 = arith.constant 0 : index
      %c0_25 = arith.constant 0 : index
      %35 = vector.load %arg8[%c0_24, %c0_25] : memref<1x32xf32, #tpu.memory_space<vmem>>, vector<1x32xf32>
      tpu.vector_store %arg8[%c0_24, %c0_25], %34 {strides = array<i32>} : memref<1x32xf32, #tpu.memory_space<vmem>>, vector<1x32xf32>,
    } else {
    }
    return
  }
  func.func @transform_0(%arg0: i32, %arg1: i32) -> (i32, i32) {
    %c0_i32 = arith.constant 0 : i32
    return %arg1, %arg0 : i32, i32
  }
  func.func @transform_1(%arg0: i32, %arg1: i32) -> (i32, i32) {
    %c0_i32 = arith.constant 0 : i32
    return %arg1, %arg0 : i32, i32
  }
  func.func @transform_2(%arg0: i32, %arg1: i32) -> (i32, i32) {
    %c0_i32 = arith.constant 0 : i32
    return %arg1, %arg0 : i32, i32
  }
  func.func @transform_3(%arg0: i32, %arg1: i32) -> (i32, i32) {
    %c0_i32 = arith.constant 0 : i32
    return %arg1, %arg0 : i32, i32
  }
  func.func @transform_4(%arg0: i32, %arg1: i32) -> (i32, i32) {
    %c0_i32 = arith.constant 0 : i32
    return %arg1, %arg0 : i32, i32
  }
  func.func @transform_5(%arg0: i32, %arg1: i32) -> (i32, i32) {
    %c0_i32 = arith.constant 0 : i32
    return %arg1, %arg0 : i32, i32
  }
  func.func @transform_6(%arg0: i32, %arg1: i32) -> (i32, i32) {
    %c0_i32 = arith.constant 0 : i32
    %c0_i32_0 = arith.constant 0 : i32
    return %c0_i32, %arg0 : i32, i32
  }
}

</mosaic_0001>

<llo_original>
// kernel: tpu_custom_call.1
$region0: #{tpu_custom_call.1}
  #allocation0 [shape = 'u32[]', space=smem, size = 0x4, offset = 0x4, fixed_abs, tag = 'smem constant byte address 0x4 - core index']
  #allocation1 [shape = 'u32[144,128]{1,0:T(1,128)}', space=vmem, size = 0x12000, scoped, tag = 'internal scratch']
  %s0 = inlined_call_operand.hbm [shape: f32[8,32], index: 0, kind: input, shape index: {}]
  %s1 = inlined_call_operand.hbm [shape: f32[8,32], index: 1, kind: input, shape index: {}]
  %s2 = inlined_call_operand.hbm [shape: f32[8,32], index: 2, kind: input, shape index: {}]
  %s3 = inlined_call_operand.vmem [shape: f32[8,32], index: 3, kind: input, shape index: {}]
  %s4 = inlined_call_operand.hbm [shape: f32[8,32], index: 4, kind: input, shape index: {}]
  %s5 = inlined_call_operand.vmem [shape: f32[8,32], index: 5, kind: input, shape index: {}]
  %s6 = inlined_call_operand.hbm [shape: f32[1,32], index: 6, kind: output, shape index: {}]
  %s7 = sld [smem:[#allocation0]]
  $region58: #{tpu_custom_call.1} parent=0
    _
  %s9 = ssub.s32 1, %s7
  %s10 = scalar_select 0, %s9, %s7
  $region1: #{tpu_custom_call.1} parent=0
    #allocation2 [shape = 'u8[4096]{0}', space=vmem, size = 0x1000, scoped, tag = 'input window, operand 0, single buffered']
    #allocation3 [shape = 's32[1]{0}', space=sflag, size = 0x4, scoped, tag = 'scoped memory for tpu_custom_call.1']
    #allocation4 [shape = 's32[1]{0}', space=sflag, size = 0x4, scoped, tag = 'scoped memory for tpu_custom_call.1']
    #allocation5 [shape = 'u8[4096]{0}', space=vmem, size = 0x1000, scoped, tag = 'input window, operand 1, single buffered']
    #allocation6 [shape = 's32[1]{0}', space=sflag, size = 0x4, scoped, tag = 'scoped memory for tpu_custom_call.1']
    #allocation7 [shape = 'u8[4096]{0}', space=vmem, size = 0x1000, scoped, tag = 'input window, operand 2, single buffered']
    #allocation8 [shape = 'u8[4096]{0}', space=vmem, size = 0x1000, scoped, tag = 'input window, operand 4, single buffered']
    #allocation9 [shape = 's32[1]{0}', space=sflag, size = 0x4, scoped, tag = 'scoped memory for tpu_custom_call.1']
    #allocation10 [shape = 'u8[512]{0}', space=vmem, size = 0x400, scoped, tag = 'output window, operand 0, single buffered']
    %11 = vsyncpa [#allocation3], 0
    %12 = vsyncpa [#allocation6], 0
    %13 = vsyncpa [#allocation9], 0
    %14 = vsyncpa [#allocation4], 0
    // Predicated region
    $region2: #{tpu_custom_call.1} parent=1 // pred_check
      _
    $region3: #{tpu_custom_call.1} parent=1 // pred_check_branch
      %16 = sbr.rel (0) target = $region5
    $region4: #{tpu_custom_call.1} parent=1 // pred_region
      %s18 = ssub.s32 128, 128
      %19 = vsyncadd [#allocation3], %s18
      %s21 = sshll.u32 [#allocation2], 4
      %s22 = int_to_ptr.vmem [resolvable:$true] %s21
      %24 = dma.hbm_to_vmem [thread:$0]  %s0, 128, %s22, [#allocation3]
    $region5: #{tpu_custom_call.1} parent=1 // pred_fallthru
      _
    // Predicated region
    $region6: #{tpu_custom_call.1} parent=1 // pred_check
      _
    $region7: #{tpu_custom_call.1} parent=1 // pred_check_branch
      %26 = sbr.rel (0) target = $region9
    $region8: #{tpu_custom_call.1} parent=1 // pred_region
      %s28 = ssub.s32 128, 128
      %29 = vsyncadd [#allocation6], %s28
      %s31 = sshll.u32 [#allocation5], 4
      %s32 = int_to_ptr.vmem [resolvable:$true] %s31
      %34 = dma.hbm_to_vmem [thread:$0]  %s1, 128, %s32, [#allocation6]
    $region9: #{tpu_custom_call.1} parent=1 // pred_fallthru
      _
    // Predicated region
    $region10: #{tpu_custom_call.1} parent=1 // pred_check
      _
    $region11: #{tpu_custom_call.1} parent=1 // pred_check_branch
      %36 = sbr.rel (0) target = $region13
    $region12: #{tpu_custom_call.1} parent=1 // pred_region
      %s38 = ssub.s32 128, 128
      %39 = vsyncadd [#allocation6], %s38
      %s41 = sshll.u32 [#allocation7], 4
      %s42 = int_to_ptr.vmem [resolvable:$true] %s41
      %44 = dma.hbm_to_vmem [thread:$0]  %s2, 128, %s42, [#allocation6]
    $region13: #{tpu_custom_call.1} parent=1 // pred_fallthru
      _
    // Predicated region
    $region14: #{tpu_custom_call.1} parent=1 // pred_check
      _
    $region15: #{tpu_custom_call.1} parent=1 // pred_check_branch
      %46 = sbr.rel (0) target = $region17
    $region16: #{tpu_custom_call.1} parent=1 // pred_region
      _
    $region17: #{tpu_custom_call.1} parent=1 // pred_fallthru
      _
    // Predicated region
    $region18: #{tpu_custom_call.1} parent=1 // pred_check
      _
    $region19: #{tpu_custom_call.1} parent=1 // pred_check_branch
      %48 = sbr.rel (0) target = $region21
    $region20: #{tpu_custom_call.1} parent=1 // pred_region
      %s50 = ssub.s32 128, 128
      %51 = vsyncadd [#allocation9], %s50
      %s53 = sshll.u32 [#allocation8], 4
      %s54 = int_to_ptr.vmem [resolvable:$true] %s53
      %56 = dma.hbm_to_vmem [thread:$0]  %s4, 128, %s54, [#allocation9]
    $region21: #{tpu_custom_call.1} parent=1 // pred_fallthru
      _
    // Predicated region
    $region22: #{tpu_custom_call.1} parent=1 // pred_check
      _
    $region23: #{tpu_custom_call.1} parent=1 // pred_check_branch
      %58 = sbr.rel (0) target = $region25
    $region24: #{tpu_custom_call.1} parent=1 // pred_region
      _
    $region25: #{tpu_custom_call.1} parent=1 // pred_fallthru
      _
    // Predicated region
    $region26: #{tpu_custom_call.1} parent=1 // pred_check
      _
    $region27: #{tpu_custom_call.1} parent=1 // pred_check_branch
      %60 = sbr.rel (0) target = $region29
    $region28: #{tpu_custom_call.1} parent=1 // pred_region
      %61 = dma.done [#allocation3], 128
    $region29: #{tpu_custom_call.1} parent=1 // pred_fallthru
      _
    // Predicated region
    $region30: #{tpu_custom_call.1} parent=1 // pred_check
      _
    $region31: #{tpu_custom_call.1} parent=1 // pred_check_branch
      %63 = sbr.rel (0) target = $region33
    $region32: #{tpu_custom_call.1} parent=1 // pred_region
      %64 = dma.done [#allocation6], 128
    $region33: #{tpu_custom_call.1} parent=1 // pred_fallthru
      _
    // Predicated region
    $region34: #{tpu_custom_call.1} parent=1 // pred_check
      _
    $region35: #{tpu_custom_call.1} parent=1 // pred_check_branch
      %66 = sbr.rel (0) target = $region37
    $region36: #{tpu_custom_call.1} parent=1 // pred_region
      %67 = dma.done [#allocation6], 128
    $region37: #{tpu_custom_call.1} parent=1 // pred_fallthru
      _
    // Predicated region
    $region38: #{tpu_custom_call.1} parent=1 // pred_check
      _
    $region39: #{tpu_custom_call.1} parent=1 // pred_check_branch
      %69 = sbr.rel (0) target = $region41
    $region40: #{tpu_custom_call.1} parent=1 // pred_region
      %70 = dma.done [#allocation9], 128
    $region41: #{tpu_custom_call.1} parent=1 // pred_fallthru
      _
    %p71 = scmp.eq.s32.totalorder 0, 0
    // Predicated region
    $region42: #{tpu_custom_call.1} parent=1 // pred_check
      %p72 = pneg %p71
    $region43: #{tpu_custom_call.1} parent=1 // pred_check_branch
      %74 = sbr.rel (%p72) target = $region45
    $region44: #{tpu_custom_call.1} parent=1 // pred_region
      %vm75 = vcmask 253952
      %76 = vst.msk [vmem:[#allocation10] sm:$0x1] %vm75, 0.0
    $region45: #{tpu_custom_call.1} parent=1 // pred_fallthru
      _
    %v77 = vld [vmem:[#allocation2] sm:$0xff]
    %v78 = vld [vmem:[#allocation5] sm:$0xff]
    %v79 = vld [vmem:[#allocation7] sm:$0xff]
    %v80 = vld [vmem:[%s3] sm:$0xff]
    %v81 = vld [vmem:[#allocation8] sm:$0xff]
    %v82 = vld [vmem:[%s5] sm:$0xff]
    %v83 = vsub.f32 %v78, %v79
    %v84 = vadd.f32 %v78, %v79
    %v85 = vmul.f32 %v77, 2.0
    %v86 = vsub.f32 %v84, %v85
    %v87 = vmul.f32 %v83, %v86
    %v88 = vsub.f32 %v81, %v82
    %v89 = vmul.f32 %v80, 2.0
    %v90 = vsub.f32 %v89, %v81
    %v91 = vsub.f32 %v90, %v82
    %v92 = vmul.f32 %v88, %v91
    %v93 = vmul.f32 %v92, 0.5
    %v94 = vadd.f32 %v87, %v93
    %v95 = vld [vmem:[#allocation10] sm:$0x1]
    %vm96 = vcmask 261120
    %v97 = vsel %vm96, %v94, 0.0
    %v98 = vrot.slane %v97, 4
    %v99 = vadd.f32 %v97, %v98
    %v100 = vrot.slane %v99, 2
    %v101 = vadd.f32 %v99, %v100
    %v102 = vrot.slane %v101, 1
    %v103 = vadd.f32 %v101, %v102
    %v104 = vadd.f32 %v95, %v103
    %vm105 = vcmask 253952
    %106 = vst.msk [vmem:[#allocation10] sm:$0x1] %vm105, %v104
    // Predicated region
    $region46: #{tpu_custom_call.1} parent=1 // pred_check
      %p107 = pneg %p71
    $region47: #{tpu_custom_call.1} parent=1 // pred_check_branch
      %109 = sbr.rel (%p107) target = $region49
    $region48: #{tpu_custom_call.1} parent=1 // pred_region
      %v110 = vld [vmem:[#allocation10] sm:$0x1]
      %v111 = vmax.f32 %v110, 0.0
      %112 = vst.msk [vmem:[#allocation10] sm:$0x1] %vm105, %v111
    $region49: #{tpu_custom_call.1} parent=1 // pred_fallthru
      _
    // Predicated region
    $region50: #{tpu_custom_call.1} parent=1 // pred_check
      _
    $region51: #{tpu_custom_call.1} parent=1 // pred_check_branch
      %114 = sbr.rel (0) target = $region53
    $region52: #{tpu_custom_call.1} parent=1 // pred_region
      %s116 = ssub.s32 16, 16
      %117 = vsyncadd [#allocation4], %s116
      %s119 = sshll.u32 [#allocation10], 4
      %s120 = int_to_ptr.vmem [resolvable:$true] %s119
      %122 = dma.vmem_to_hbm [thread:$0]  %s120, 16, %s6, [#allocation4]
    $region53: #{tpu_custom_call.1} parent=1 // pred_fallthru
      _
    // Predicated region
    $region54: #{tpu_custom_call.1} parent=1 // pred_check
      _
    $region55: #{tpu_custom_call.1} parent=1 // pred_check_branch
      %124 = sbr.rel (0) target = $region57
    $region56: #{tpu_custom_call.1} parent=1 // pred_region
      %125 = dma.done [#allocation4], 16
    $region57: #{tpu_custom_call.1} parent=1 // pred_fallthru
      _
    %126 = vsyncpa [#allocation3], 1
    %127 = vsyncpa [#allocation6], 1
    %128 = vsyncpa [#allocation9], 1
    %129 = vsyncpa [#allocation4], 1

</llo_original>
